<compile_context>
chip_gen: v7x
topology: tpu7x:2x2x1
jax: 0.10.0
libtpu: 0.0.40
codegen_flags: <defaults>
</compile_context>

<pallas_src>
import functools

import jax
import jax.numpy as jnp
from jax.experimental import pallas as pl
from jax.experimental.pallas import tpu as pltpu


def _round_up(a, m):
    return (a + m - 1) // m * m


def _style_conv_kernel(s_ref, w_ref, x_ref, out_ref, wmod_ref, *,
                       k, wp, tile, demodulate, eps):
    """Grid = (batch b, hw tile t).

    s_ref    : (1, 1, k*k*Cin) f32      per-batch style scale, tiled over taps
    w_ref    : (Cout, k*k*Cin) f32      shared conv weight, (ky, kx, cin)-minor layout
    x_ref    : (1, 1, Cin, tile+halo)   bf16 halo-extended window of padded, flattened x
    out_ref  : (1, Cout, tile)          output tile (flat spatial on lanes)
    wmod_ref : (Cout, k*k*Cin) bf16     VMEM scratch: per-batch modulated weight
    """
    t = pl.program_id(1)

    # Modulate (+ demodulate) the weight once per batch element; the scratch is reused
    # for every hw tile of that batch (hence the hw axis is "arbitrary").
    @pl.when(t == 0)
    def _():
        w = w_ref[...] * s_ref[0]                       # f32, (Cout, k*k*Cin)
        if demodulate:
            w = w * jax.lax.rsqrt(jnp.sum(w * w, axis=1, keepdims=True) + eps)
        wmod_ref[...] = w.astype(jnp.bfloat16)

    # im2col inside the kernel: tap (ky, kx) is the static lane offset ky*Wp + kx into the
    # halo-extended window.  Concatenate the k*k taps along the contraction axis so the
    # whole conv is ONE bf16 MXU matmul with K = k*k*Cin and f32 accumulation.
    taps = []
    for ky in range(k):
        for kx in range(k):
            off = ky * wp + kx
            taps.append(x_ref[0, 0, :, off:off + tile])      # (Cin, tile) bf16
    patches = jnp.concatenate(taps, axis=0)                  # (k*k*Cin, tile) bf16

    acc = jnp.dot(wmod_ref[...], patches,
                  preferred_element_type=jnp.float32)        # (Cout, tile) f32
    out_ref[0] = acc.astype(out_ref.dtype)


def style_conv2d(x, style, weight, mod_w, mod_b, *, demodulate=True, eps=1e-5,
                 hw_tile=2048):
    """Pallas implementation of StyleConv2D.forward (no upsample/downsample).

    hw_tile: lane width of one output tile (rounded to a multiple of 128). Size it for the
    target generation's VMEM (e.g. ~2048 for Cin=512 on v7x's 64 MiB, up to 4096 on
    v5e/v6e's 128 MiB).
    """
    B, Cin, H, W = x.shape
    _, Cout, _, k, _ = weight.shape   # assumes weight.shape[0] == 1 (shared conv weight)
    kk = k * k
    KK = kk * Cin

    # 'same' padding for the stride-1 conv (calc_pool2d_pad equivalent; k=3 -> (1,1,1,1)).
    tot = k - 1
    p0, p1 = tot // 2, tot - tot // 2
    Hp, Wp = H + tot, W + tot

    # Flat-spatial geometry: output position (y, x) lives at flat index y*Wp + x, and conv
    # tap (ky, kx) is the flat offset ky*Wp + kx into the zero-padded, flattened input.
    n_out = (H - 1) * Wp + W                      # last valid output flat index + 1
    tile = _round_up(min(hw_tile, _round_up(n_out, 128)), 128)
    num_t = pl.cdiv(n_out, tile)
    halo = tot * Wp + tot                         # extra lanes a tile reads past its start
    n_ext = num_t * tile + halo

    # --- wrapper-side prep (cheap data movement / tiny math only) ---
    # Style EqualLinear hoisted out of the kernel: one batched matmul.
    s = style @ mod_w.T + mod_b + 1.0                                  # (B, Cin)
    s_t = jnp.tile(s, (1, kk)).reshape(B, 1, KK).astype(jnp.float32)   # tap-tiled scale

    # Weight in (Cout, (ky, kx, cin)) layout to match the patch concatenation order.
    w2d = jnp.transpose(weight[0], (0, 2, 3, 1)).reshape(Cout, KK).astype(jnp.float32)

    # Zero-pad spatially, flatten spatial, then cut overlapping halo windows per hw tile
    # in bf16 (halves HBM traffic / VMEM; overlap is only ~halo/tile extra bytes, vs. the
    # 9x blow-up of a full im2col in HBM).
    xp = jnp.pad(x, ((0, 0), (0, 0), (p0, p1), (p0, p1)))
    xflat = xp.reshape(B, Cin, Hp * Wp)
    xflat = jnp.pad(xflat, ((0, 0), (0, 0), (0, n_ext - Hp * Wp)))
    x_win = jnp.stack([xflat[:, :, i * tile:i * tile + tile + halo]
                       for i in range(num_t)], axis=1).astype(jnp.bfloat16)

    kernel = functools.partial(_style_conv_kernel, k=k, wp=Wp, tile=tile,
                               demodulate=demodulate, eps=eps)

    out = pl.pallas_call(
        kernel,
        out_shape=jax.ShapeDtypeStruct((B, Cout, num_t * tile), x.dtype),
        grid_spec=pltpu.PrefetchScalarGridSpec(
            num_scalar_prefetch=0,
            grid=(B, num_t),
            in_specs=[
                pl.BlockSpec((1, 1, KK), lambda b, t: (b, 0, 0)),             # style scale
                pl.BlockSpec((Cout, KK), lambda b, t: (0, 0)),                # weight (resident)
                pl.BlockSpec((1, 1, Cin, tile + halo), lambda b, t: (b, t, 0, 0)),  # x window
            ],
            out_specs=pl.BlockSpec((1, Cout, tile), lambda b, t: (b, 0, t)),
            scratch_shapes=[pltpu.VMEM((Cout, KK), jnp.bfloat16)],
        ),
        compiler_params=pltpu.CompilerParams(
            # batch is independent ("parallel" -> megacore sharding); the hw axis carries
            # the per-batch modulated-weight scratch, so it must stay "arbitrary".
            dimension_semantics=("parallel", "arbitrary"),
            vmem_limit_bytes=48 * 1024 * 1024,
        ),
    )(s_t, w2d, x_win)

    # Un-flatten: keep valid flat positions, restore the Wp row stride, drop pad columns.
    out = out[:, :, :n_out]
    out = jnp.pad(out, ((0, 0), (0, 0), (0, tot)))
    return out.reshape(B, Cout, H, Wp)[:, :, :, :W]


def style_conv2d_ref(x, style, weight, mod_w, mod_b, *, demodulate=True, eps=1e-5):
    """Pure-JAX reference mirroring the PyTorch forward (grouped conv, f32)."""
    B, Cin, H, W = x.shape
    _, Cout, _, k, _ = weight.shape
    s = style @ mod_w.T + mod_b + 1.0                      # (B, Cin)
    w = jnp.repeat(weight, B, axis=0)                      # (B, Cout, Cin, k, k)
    if demodulate:
        w = w * s.reshape(B, 1, Cin, 1, 1)
        demod = jax.lax.rsqrt(jnp.sum(w ** 2, axis=(2, 3, 4), keepdims=True) + eps)
        w = w * demod
    else:
        x = x * s.reshape(B, Cin, 1, 1)
    w = w.reshape(B * Cout, Cin, k, k)
    tot = k - 1
    p0, p1 = tot // 2, tot - tot // 2
    xg = jnp.pad(x.reshape(1, B * Cin, H, W), ((0, 0), (0, 0), (p0, p1), (p0, p1)))
    out = jax.lax.conv_general_dilated(
        xg, w, window_strides=(1, 1), padding='VALID',
        dimension_numbers=('NCHW', 'OIHW', 'NCHW'),
        feature_group_count=B, precision=jax.lax.Precision.HIGHEST)
    return out.reshape(B, Cout, H, W)


if __name__ == "__main__":
    B, Cin, Cout, k, style_dim, size = 2, 4, 8, 3, 32, 16

    key = jax.random.PRNGKey(0)
    k1, k2, k3, k4 = jax.random.split(key, 4)
    x = jax.random.normal(k1, (B, Cin, size, size), jnp.float32)
    style = jax.random.normal(k2, (B, style_dim), jnp.float32)
    # conv weight (1, Cout, Cin, k, k), kaiming-normal-like deterministic init
    weight = jax.random.normal(k3, (1, Cout, Cin, k, k), jnp.float32) * jnp.sqrt(2.0 / (Cin * k * k))
    # EqualLinear(style_dim, Cin): kaiming-normal weight, zero bias
    mod_w = jax.random.normal(k4, (Cin, style_dim), jnp.float32) * jnp.sqrt(2.0 / style_dim)
    mod_b = jnp.zeros((Cin,), jnp.float32)

    # Exercise both the demodulate paths and both multi-tile (hw_tile=128 -> 3 tiles) and
    # single-tile grids.  Tolerance is sized for bf16 MXU operands with f32 accumulation
    # (expected max abs error ~1e-2 at these magnitudes); real bugs (wrong tap offset,
    # wrong demod) produce O(1) errors and would still trip this check.
    for demod, hw_tile in ((True, 128), (False, 384)):
        out = style_conv2d(x, style, weight, mod_w, mod_b,
                           demodulate=demod, hw_tile=hw_tile)
        out = jax.block_until_ready(out)
        ref = style_conv2d_ref(x, style, weight, mod_w, mod_b, demodulate=demod)
        assert out.shape == (B, Cout, size, size)
        max_err = float(jnp.max(jnp.abs(out - ref)))
        assert jnp.allclose(out, ref, atol=5e-2, rtol=5e-2), \
            f"demodulate={demod} hw_tile={hw_tile} max_err={max_err}"

    print("KERNEL_OK")
</pallas_src>

<mosaic_0001>
module attributes {stable_mosaic.version = 11 : i64} {
  func.func @_style_conv_kernel(%arg0: i32, %arg1: i32, %arg2: memref<1x1x36xf32, #tpu.memory_space<vmem>>, %arg3: memref<8x36xf32, #tpu.memory_space<vmem>>, %arg4: memref<1x1x4x166xbf16, #tpu.memory_space<vmem>>, %arg5: memref<1x8x128xf32, #tpu.memory_space<vmem>>, %arg6: memref<8x36xbf16, #tpu.memory_space<vmem>>) attributes {dimension_semantics = [#tpu.dimension_semantics<parallel>, #tpu.dimension_semantics<arbitrary>], iteration_bounds = array<i64: 2, 3>, scalar_prefetch = 0 : i64, scratch_operands = 1 : i64, tpu.core_type = #tpu.core_type<tc>, window_params = [{transform_indices = @transform_0, window_bounds = array<i64: 1, 1, 36>}, {pipeline_mode = #tpu.pipeline_mode<synchronous>, transform_indices = @transform_1, window_bounds = array<i64: 8, 36>}, {transform_indices = @transform_2, window_bounds = array<i64: 1, 1, 4, 166>}, {transform_indices = @transform_3, window_bounds = array<i64: 1, 8, 128>}]} {
    %c0_i32 = arith.constant 0 : i32
    %0 = arith.cmpi eq, %arg1, %c0_i32 : i32
    %1 = arith.extui %0 : i1 to i32
    %c0_i32_0 = arith.constant 0 : i32
    %2 = arith.cmpi ne, %1, %c0_i32_0 : i32
    scf.if %2 {
      %c0_33 = arith.constant 0 : index
      %c0_34 = arith.constant 0 : index
      %27 = vector.load %arg3[%c0_33, %c0_34] : memref<8x36xf32, #tpu.memory_space<vmem>>, vector<8x36xf32>
      %c0_35 = arith.constant 0 : index
      %c0_36 = arith.constant 0 : index
      %c0_37 = arith.constant 0 : index
      %28 = vector.load %arg2[%c0_35, %c0_36, %c0_37] : memref<1x1x36xf32, #tpu.memory_space<vmem>>, vector<1x1x36xf32>
      %29 = vector.shape_cast %28 : vector<1x1x36xf32> to vector<1x36xf32>
      %30 = vector.broadcast %29 : vector<1x36xf32> to vector<8x36xf32>
      %31 = arith.mulf %27, %30 : vector<8x36xf32>
      %32 = arith.mulf %31, %31 : vector<8x36xf32>
      %cst_38 = arith.constant dense<0.000000e+00> : vector<8xf32>
      %33 = vector.multi_reduction <add>, %32, %cst_38 [1] : vector<8x36xf32> to vector<8xf32>
      %34 = vector.shape_cast %33 : vector<8xf32> to vector<8x1xf32>
      %cst_39 = arith.constant 9.99999974E-6 : f32
      %35 = vector.broadcast %cst_39 : f32 to vector<8x1xf32>
      %36 = arith.addf %34, %35 : vector<8x1xf32>
      %37 = math.rsqrt %36 : vector<8x1xf32>
      %38 = vector.broadcast %37 : vector<8x1xf32> to vector<8x36xf32>
      %39 = arith.mulf %31, %38 : vector<8x36xf32>
      %40 = arith.truncf %39 : vector<8x36xf32> to vector<8x36xbf16>
      %c0_40 = arith.constant 0 : index
      %c0_41 = arith.constant 0 : index
      %41 = vector.load %arg6[%c0_40, %c0_41] : memref<8x36xbf16, #tpu.memory_space<vmem>>, vector<8x36xbf16>
      tpu.vector_store %arg6[%c0_40, %c0_41], %40 {strides = array<i32>} : memref<8x36xbf16, #tpu.memory_space<vmem>>, vector<8x36xbf16>,
    } else {
    }
    %c0 = arith.constant 0 : index
    %c0_1 = arith.constant 0 : index
    %c0_2 = arith.constant 0 : index
    %c0_3 = arith.constant 0 : index
    %3 = vector.load %arg4[%c0, %c0_1, %c0_2, %c0_3] : memref<1x1x4x166xbf16, #tpu.memory_space<vmem>>, vector<1x1x4x128xbf16>
    %4 = vector.shape_cast %3 : vector<1x1x4x128xbf16> to vector<4x128xbf16>
    %c0_4 = arith.constant 0 : index
    %c0_5 = arith.constant 0 : index
    %c0_6 = arith.constant 0 : index
    %c1 = arith.constant 1 : index
    %5 = vector.load %arg4[%c0_4, %c0_5, %c0_6, %c1] : memref<1x1x4x166xbf16, #tpu.memory_space<vmem>>, vector<1x1x4x128xbf16>
    %6 = vector.shape_cast %5 : vector<1x1x4x128xbf16> to vector<4x128xbf16>
    %c0_7 = arith.constant 0 : index
    %c0_8 = arith.constant 0 : index
    %c0_9 = arith.constant 0 : index
    %c2 = arith.constant 2 : index
    %7 = vector.load %arg4[%c0_7, %c0_8, %c0_9, %c2] : memref<1x1x4x166xbf16, #tpu.memory_space<vmem>>, vector<1x1x4x128xbf16>
    %8 = vector.shape_cast %7 : vector<1x1x4x128xbf16> to vector<4x128xbf16>
    %c0_10 = arith.constant 0 : index
    %c0_11 = arith.constant 0 : index
    %c0_12 = arith.constant 0 : index
    %c18 = arith.constant 18 : index
    %9 = vector.load %arg4[%c0_10, %c0_11, %c0_12, %c18] : memref<1x1x4x166xbf16, #tpu.memory_space<vmem>>, vector<1x1x4x128xbf16>
    %10 = vector.shape_cast %9 : vector<1x1x4x128xbf16> to vector<4x128xbf16>
    %c0_13 = arith.constant 0 : index
    %c0_14 = arith.constant 0 : index
    %c0_15 = arith.constant 0 : index
    %c19 = arith.constant 19 : index
    %11 = vector.load %arg4[%c0_13, %c0_14, %c0_15, %c19] : memref<1x1x4x166xbf16, #tpu.memory_space<vmem>>, vector<1x1x4x128xbf16>
    %12 = vector.shape_cast %11 : vector<1x1x4x128xbf16> to vector<4x128xbf16>
    %c0_16 = arith.constant 0 : index
    %c0_17 = arith.constant 0 : index
    %c0_18 = arith.constant 0 : index
    %c20 = arith.constant 20 : index
    %13 = vector.load %arg4[%c0_16, %c0_17, %c0_18, %c20] : memref<1x1x4x166xbf16, #tpu.memory_space<vmem>>, vector<1x1x4x128xbf16>
    %14 = vector.shape_cast %13 : vector<1x1x4x128xbf16> to vector<4x128xbf16>
    %c0_19 = arith.constant 0 : index
    %c0_20 = arith.constant 0 : index
    %c0_21 = arith.constant 0 : index
    %c36 = arith.constant 36 : index
    %15 = vector.load %arg4[%c0_19, %c0_20, %c0_21, %c36] : memref<1x1x4x166xbf16, #tpu.memory_space<vmem>>, vector<1x1x4x128xbf16>
    %16 = vector.shape_cast %15 : vector<1x1x4x128xbf16> to vector<4x128xbf16>
    %c0_22 = arith.constant 0 : index
    %c0_23 = arith.constant 0 : index
    %c0_24 = arith.constant 0 : index
    %c37 = arith.constant 37 : index
    %17 = vector.load %arg4[%c0_22, %c0_23, %c0_24, %c37] : memref<1x1x4x166xbf16, #tpu.memory_space<vmem>>, vector<1x1x4x128xbf16>
    %18 = vector.shape_cast %17 : vector<1x1x4x128xbf16> to vector<4x128xbf16>
    %c0_25 = arith.constant 0 : index
    %c0_26 = arith.constant 0 : index
    %c0_27 = arith.constant 0 : index
    %c38 = arith.constant 38 : index
    %19 = vector.load %arg4[%c0_25, %c0_26, %c0_27, %c38] : memref<1x1x4x166xbf16, #tpu.memory_space<vmem>>, vector<1x1x4x128xbf16>
    %20 = vector.shape_cast %19 : vector<1x1x4x128xbf16> to vector<4x128xbf16>
    %21 = tpu.concatenate %4, %6, %8, %10, %12, %14, %16, %18, %20 in 0 : vector<4x128xbf16>, vector<4x128xbf16>, vector<4x128xbf16>, vector<4x128xbf16>, vector<4x128xbf16>, vector<4x128xbf16>, vector<4x128xbf16>, vector<4x128xbf16>, vector<4x128xbf16> -> vector<36x128xbf16>
    %c0_28 = arith.constant 0 : index
    %c0_29 = arith.constant 0 : index
    %22 = vector.load %arg6[%c0_28, %c0_29] : memref<8x36xbf16, #tpu.memory_space<vmem>>, vector<8x36xbf16>
    %cst = arith.constant dense<0.000000e+00> : vector<8x128xf32>
    %23 = tpu.matmul %22, %21, %cst {dimension_numbers = #tpu.dot_dimension_numbers<[1], [0], [0], [1], [0, 0, 1, 1], [], []>} : vector<8x36xbf16>, vector<36x128xbf16>, vector<8x128xf32> -> vector<8x128xf32>
    %c0_30 = arith.constant 0 : index
    %c0_31 = arith.constant 0 : index
    %c0_32 = arith.constant 0 : index
    %24 = vector.load %arg5[%c0_30, %c0_31, %c0_32] : memref<1x8x128xf32, #tpu.memory_space<vmem>>, vector<1x8x128xf32>
    %25 = vector.shape_cast %24 : vector<1x8x128xf32> to vector<8x128xf32>
    %26 = vector.shape_cast %23 : vector<8x128xf32> to vector<1x8x128xf32>
    tpu.vector_store %arg5[%c0_30, %c0_31, %c0_32], %26 {strides = array<i32>} : memref<1x8x128xf32, #tpu.memory_space<vmem>>, vector<1x8x128xf32>,
    return
  }
  func.func @transform_0(%arg0: i32, %arg1: i32) -> (i32, i32, i32) {
    %c0_i32 = arith.constant 0 : i32
    %c0_i32_0 = arith.constant 0 : i32
    %c0_i32_1 = arith.constant 0 : i32
    return %arg0, %c0_i32, %c0_i32_0 : i32, i32, i32
  }
  func.func @transform_1(%arg0: i32, %arg1: i32) -> (i32, i32) {
    %c0_i32 = arith.constant 0 : i32
    %c0_i32_0 = arith.constant 0 : i32
    %c0_i32_1 = arith.constant 0 : i32
    return %c0_i32, %c0_i32_0 : i32, i32
  }
  func.func @transform_2(%arg0: i32, %arg1: i32) -> (i32, i32, i32, i32) {
    %c0_i32 = arith.constant 0 : i32
    %c0_i32_0 = arith.constant 0 : i32
    %c0_i32_1 = arith.constant 0 : i32
    return %arg0, %arg1, %c0_i32, %c0_i32_0 : i32, i32, i32, i32
  }
  func.func @transform_3(%arg0: i32, %arg1: i32) -> (i32, i32, i32) {
    %c0_i32 = arith.constant 0 : i32
    %c0_i32_0 = arith.constant 0 : i32
    return %arg0, %c0_i32, %arg1 : i32, i32, i32
  }
}

</mosaic_0001>

<llo_original>
// kernel: tpu_custom_call.1
$region0: #{tpu_custom_call.1}
  #allocation0 [shape = 'u32[]', space=smem, size = 0x4, offset = 0x4, fixed_abs, tag = 'smem constant byte address 0x4 - core index']
  #allocation1 [shape = 'u32[144,128]{1,0:T(1,128)}', space=vmem, size = 0x12000, scoped, tag = 'internal scratch']
  #allocation2 [shape = 'bf16[8,36]{1,0:T(8,128)(2,1)}', space=vmem, size = 0x800, scoped, tag = 'scratch operand']
  %s0 = inlined_call_operand.hbm [shape: f32[2,1,36], index: 0, kind: input, shape index: {}]
  %s1 = inlined_call_operand.hbm [shape: f32[8,36], index: 1, kind: input, shape index: {}]
  %s2 = inlined_call_operand.hbm [shape: bf16[2,3,4,166], index: 2, kind: input, shape index: {}]
  %s3 = inlined_call_operand.hbm [shape: f32[2,8,384], index: 3, kind: output, shape index: {}]
  %s4 = sld [smem:[#allocation0]]
  $region61: #{tpu_custom_call.1} parent=0
    _
  %s6 = ssub.s32 1, %s4
  %s7 = scalar_select 0, %s6, %s4
  $region1: #{tpu_custom_call.1} parent=0
    #allocation3 [shape = 'u8[1024]{0}', space=vmem, size = 0x400, scoped, tag = 'input window, operand 0']
    #allocation4 [shape = 's32[2]{0}', space=sflag, size = 0x8, scoped, tag = 'scoped memory for tpu_custom_call.1']
    #allocation5 [shape = 's32[2]{0}', space=sflag, size = 0x8, scoped, tag = 'scoped memory for tpu_custom_call.1']
    #allocation6 [shape = 'u8[4096]{0}', space=vmem, size = 0x1000, scoped, tag = 'input window, operand 1, single buffered']
    #allocation7 [shape = 's32[1]{0}', space=sflag, size = 0x4, scoped, tag = 'scoped memory for tpu_custom_call.1']
    #allocation8 [shape = 'u8[4096]{0}', space=vmem, size = 0x1000, scoped, tag = 'input window, operand 2']
    #allocation9 [shape = 'u8[8192]{0}', space=vmem, size = 0x2000, scoped, tag = 'output window, operand 0']
    %8 = vsyncpa [#allocation4], 0
    %s9 = scalar_lea.sflag [#allocation4], 1
    %10 = vsyncpa %s9, 0
    %11 = vsyncpa [#allocation7], 0
    %12 = vsyncpa [#allocation5], 0
    %s13 = scalar_lea.sflag [#allocation5], 1
    %14 = vsyncpa %s13, 0
    loop: start=0, step=1, limit=8
    $region2: #{tpu_custom_call.1} parent=1 // loop_pre_header
      _
    $region3: #{tpu_custom_call.1} parent=1 // loop_header
      %s16 = sphi 0, %s20
      %p17 = scmp.ge.s32.totalorder %s16, 8
      %s23 = sphi 0, %s35
      %s24 = sphi 0, %s31
      %s25 = sphi 0, %s23
      %s26 = sphi 0, %s24
      %s27 = sphi 0, %s25
      %s28 = sphi 0, %s26
      %s38 = sphi 0, %s40
      %s41 = sphi 0, %s38
      %s42 = sphi 0, %s41
      %s58 = sphi 0, %s42
      %s62 = sphi 0, %s62
      %s64 = sphi 0, %s62
      %s65 = sphi 0, %s64
      %s79 = sphi 0, %s65
      %s87 = sphi 0, %s89
      %s90 = sphi 0, %s87
      %s91 = sphi 0, %s90
      %s107 = sphi 0, %s91
      %s115 = sphi 0, %s117
      %s118 = sphi 0, %s115
      %s119 = sphi 0, %s118
      %s135 = sphi 0, %s119
    $region4: #{tpu_custom_call.1} parent=1 // loop_header_branch
      %19 = sbr.rel (%p17) target = $region8
    $region5: #{tpu_custom_call.1} parent=1 // loop_body
      %s21 = ssub.s32 %s16, 1
      %s22 = ssub.s32 %s16, 2
      %s29 = sadd.s32 1, %s24
      %p30 = scmp.ge.s32.totalorder %s29, 3
      %s31 = scalar_select %p30, 0, %s29
      %s32 = sadd.s32 1, %s23
      %s33 = scalar_select %p30, %s32, %s23
      %p34 = scmp.ge.s32.totalorder %s33, 2
      %s35 = scalar_select %p34, 0, %s33
      %s36 = ssub.s32 %s23, %s35
      %p37 = scmp.eq.s32.totalorder %s36, 0
      %s39 = sadd.s32 %s38, 1
      %s40 = scalar_select %p37, %s38, %s39
      %p43 = pneg %p37
      %p44 = scmp.eq.s32.totalorder %s16, 5
      %p45 = por %p43, %p44
      %p46 = scmp.ne.s32.totalorder %s38, %s41
      %p47 = scmp.eq.s32.totalorder %s16, 0
      %p48 = por %p46, %p47
      %p49 = scmp.ne.s32.totalorder %s38, %s41
      %p50 = scmp.eq.s32.totalorder %s21, 5
      %p51 = por %p49, %p50
      %p52 = scmp.ne.s32.totalorder %s41, %s42
      %p53 = scmp.eq.s32.totalorder %s21, 0
      %p54 = por %p52, %p53
      %p55 = scmp.ne.s32.totalorder %s41, %s42
      %p56 = scmp.eq.s32.totalorder %s22, 5
      %p57 = por %p55, %p56
      %p59 = scmp.ne.s32.totalorder %s42, %s58
      %p60 = scmp.eq.s32.totalorder %s22, 0
      %p61 = por %p59, %p60
      %s63 = sadd.s32 %s62, 1
      %p66 = scmp.eq.s32.totalorder %s16, 5
      %p67 = scmp.ne.s32.totalorder %s62, %s64
      %p68 = scmp.eq.s32.totalorder %s16, 0
      %p69 = por %p67, %p68
      %p70 = scmp.ne.s32.totalorder %s62, %s64
      %p71 = scmp.eq.s32.totalorder %s21, 5
      %p72 = por %p70, %p71
      %p73 = scmp.ne.s32.totalorder %s64, %s65
      %p74 = scmp.eq.s32.totalorder %s21, 0
      %p75 = por %p73, %p74
      %p76 = scmp.ne.s32.totalorder %s64, %s65
      %p77 = scmp.eq.s32.totalorder %s22, 5
      %p78 = por %p76, %p77
      %p80 = scmp.ne.s32.totalorder %s65, %s79
      %p81 = scmp.eq.s32.totalorder %s22, 0
      %p82 = por %p80, %p81
      %s83 = ssub.s32 %s23, %s35
      %s84 = ssub.s32 %s24, %s31
      %s85 = sor.u32 %s83, %s84
      %p86 = scmp.eq.s32.totalorder %s85, 0
      %s88 = sadd.s32 %s87, 1
      %s89 = scalar_select %p86, %s87, %s88
      %p92 = pneg %p86
      %p93 = scmp.eq.s32.totalorder %s16, 5
      %p94 = por %p92, %p93
      %p95 = scmp.ne.s32.totalorder %s87, %s90
      %p96 = scmp.eq.s32.totalorder %s16, 0
      %p97 = por %p95, %p96
      %p98 = scmp.ne.s32.totalorder %s87, %s90
      %p99 = scmp.eq.s32.totalorder %s21, 5
      %p100 = por %p98, %p99
      %p101 = scmp.ne.s32.totalorder %s90, %s91
      %p102 = scmp.eq.s32.totalorder %s21, 0
      %p103 = por %p101, %p102
      %p104 = scmp.ne.s32.totalorder %s90, %s91
      %p105 = scmp.eq.s32.totalorder %s22, 5
      %p106 = por %p104, %p105
      %p108 = scmp.ne.s32.totalorder %s91, %s107
      %p109 = scmp.eq.s32.totalorder %s22, 0
      %p110 = por %p108, %p109
      %s111 = ssub.s32 %s23, %s35
      %s112 = ssub.s32 %s24, %s31
      %s113 = sor.u32 %s111, %s112
      %p114 = scmp.eq.s32.totalorder %s113, 0
      %s116 = sadd.s32 %s115, 1
      %s117 = scalar_select %p114, %s115, %s116
      %p120 = pneg %p114
      %p121 = scmp.eq.s32.totalorder %s16, 5
      %p122 = por %p120, %p121
      %p123 = scmp.ne.s32.totalorder %s115, %s118
      %p124 = scmp.eq.s32.totalorder %s16, 0
      %p125 = por %p123, %p124
      %p126 = scmp.ne.s32.totalorder %s115, %s118
      %p127 = scmp.eq.s32.totalorder %s21, 5
      %p128 = por %p126, %p127
      %p129 = scmp.ne.s32.totalorder %s118, %s119
      %p130 = scmp.eq.s32.totalorder %s21, 0
      %p131 = por %p129, %p130
      %p132 = scmp.ne.s32.totalorder %s118, %s119
      %p133 = scmp.eq.s32.totalorder %s22, 5
      %p134 = por %p132, %p133
      %p136 = scmp.ne.s32.totalorder %s119, %s135
      %p137 = scmp.eq.s32.totalorder %s22, 0
      %p138 = por %p136, %p137
      %p139 = scmp.le.s32.totalorder 1, %s16
      %p140 = scmp.lt.s32.totalorder %s16, 7
      %p141 = pnand %p139, %p140
      %p142 = pneg %p141
      // Predicated region
      $region9: #{tpu_custom_call.1} parent=5 // pred_check
        _
      $region10: #{tpu_custom_call.1} parent=5 // pred_check_branch
        %144 = sbr.rel (%p141) target = $region12
      $region11: #{tpu_custom_call.1} parent=5 // pred_region
        %s145 = ssub.s32 %s16, 1
        // Predicated region
        $region13: #{tpu_custom_call.1} parent=11 // pred_check
          %p146 = pneg %p75
        $region14: #{tpu_custom_call.1} parent=11 // pred_check_branch
          %148 = sbr.rel (%p146) target = $region16
        $region15: #{tpu_custom_call.1} parent=11 // pred_region
          %s150 = ssub.s32 128, 128
          %151 = vsyncadd [#allocation7], %s150
          %s153 = sshll.u32 [#allocation6], 4
          %s154 = int_to_ptr.vmem [resolvable:$true] %s153
          %156 = dma.hbm_to_vmem [thread:$0]  %s1, 128, %s154, [#allocation7]
        $region16: #{tpu_custom_call.1} parent=11 // pred_fallthru
          _
      $region12: #{tpu_custom_call.1} parent=5 // pred_fallthru
        _
      %p157 = scmp.lt.s32.totalorder %s16, 6
      // Predicated region
      $region17: #{tpu_custom_call.1} parent=5 // pred_check
        %p158 = pneg %p157
      $region18: #{tpu_custom_call.1} parent=5 // pred_check_branch
        %160 = sbr.rel (%p158) target = $region20
      $region19: #{tpu_custom_call.1} parent=5 // pred_region
        // Predicated region
        $region21: #{tpu_custom_call.1} parent=19 // pred_check
          %p161 = pneg %p48
        $region22: #{tpu_custom_call.1} parent=19 // pred_check_branch
          %163 = sbr.rel (%p161) target = $region24
        $region23: #{tpu_custom_call.1} parent=19 // pred_region
          %s164 = sand.u32 %s16, 1
          %s165 = scalar_lea.sflag [#allocation4], %s164
          %s166 = sand.u32 %s38, 1
          %s167 = scalar_lea.vmem [#allocation3], %s166
          %s169 = ssub.s32 16, 16
          %170 = vsyncadd %s165, %s169
          %s171 = smul.addr %s23, 16
          %s172 = scalar_lea.hbm %s0, %s171
          %s174 = sshll.u32 %s167, 4
          %s175 = int_to_ptr.vmem [resolvable:$true] %s174
          %177 = dma.hbm_to_vmem [thread:$0]  %s172, 16, %s175, %s165
        $region24: #{tpu_custom_call.1} parent=19 // pred_fallthru
          _
        // Predicated region
        $region25: #{tpu_custom_call.1} parent=19 // pred_check
          %p178 = pneg %p97
        $region26: #{tpu_custom_call.1} parent=19 // pred_check_branch
          %180 = sbr.rel (%p178) target = $region28
        $region27: #{tpu_custom_call.1} parent=19 // pred_region
          %s181 = sand.u32 %s16, 1
          %s182 = scalar_lea.sflag [#allocation4], %s181
          %s183 = sand.u32 %s87, 1
          %s184 = smul.addr %s183, 4
          %s185 = scalar_lea.vmem [#allocation8], %s184
          %s187 = ssub.s32 64, 64
          %188 = vsyncadd %s182, %s187
          %s189 = smul.addr %s24, 2
          %s190 = smul.addr %s23, 6
          %s191 = sadd.s32 %s189, %s190
          %s192 = smul.addr %s191, 32
          %s193 = scalar_lea.hbm %s2, %s192
          %s195 = sshll.u32 %s185, 4
          %s196 = int_to_ptr.vmem [resolvable:$true] %s195
          %198 = dma.hbm_to_vmem [thread:$0]  %s193, 64, %s196, %s182
        $region28: #{tpu_custom_call.1} parent=19 // pred_fallthru
          _
      $region20: #{tpu_custom_call.1} parent=5 // pred_fallthru
        _
      %p199 = scmp.le.s32.totalorder 1, %s16
      %p200 = scmp.lt.s32.totalorder %s16, 7
      %p201 = pnand %p199, %p200
      %p202 = pneg %p201
      // Predicated region
      $region29: #{tpu_custom_call.1} parent=5 // pred_check
        _
      $region30: #{tpu_custom_call.1} parent=5 // pred_check_branch
        %204 = sbr.rel (%p201) target = $region32
      $region31: #{tpu_custom_call.1} parent=5 // pred_region
        %s205 = ssub.s32 %s16, 1
        %s206 = sand.u32 %s21, 1
        %s207 = scalar_lea.sflag [#allocation4], %s206
        %s208 = sand.u32 %s41, 1
        %s209 = scalar_lea.vmem [#allocation3], %s208
        // Predicated region
        $region33: #{tpu_custom_call.1} parent=31 // pred_check
          %p210 = pneg %p54
        $region34: #{tpu_custom_call.1} parent=31 // pred_check_branch
          %212 = sbr.rel (%p210) target = $region36
        $region35: #{tpu_custom_call.1} parent=31 // pred_region
          %213 = dma.done %s207, 16
        $region36: #{tpu_custom_call.1} parent=31 // pred_fallthru
          _
        // Predicated region
        $region37: #{tpu_custom_call.1} parent=31 // pred_check
          %p214 = pneg %p75
        $region38: #{tpu_custom_call.1} parent=31 // pred_check_branch
          %216 = sbr.rel (%p214) target = $region40
        $region39: #{tpu_custom_call.1} parent=31 // pred_region
          %217 = dma.done [#allocation7], 128
        $region40: #{tpu_custom_call.1} parent=31 // pred_fallthru
          _
        %s218 = sand.u32 %s21, 1
        %s219 = scalar_lea.sflag [#allocation4], %s218
        %s220 = sand.u32 %s90, 1
        %s221 = smul.addr %s220, 4
        %s222 = scalar_lea.vmem [#allocation8], %s221
        // Predicated region
        $region41: #{tpu_custom_call.1} parent=31 // pred_check
          %p223 = pneg %p103
        $region42: #{tpu_custom_call.1} parent=31 // pred_check_branch
          %225 = sbr.rel (%p223) target = $region44
        $region43: #{tpu_custom_call.1} parent=31 // pred_region
          %226 = dma.done %s219, 64
        $region44: #{tpu_custom_call.1} parent=31 // pred_fallthru
          _
        %s227 = sand.u32 %s21, 1
        %s228 = scalar_lea.sflag [#allocation4], %s227
        %s229 = sand.u32 %s41, 1
        %s230 = scalar_lea.vmem [#allocation3], %s229
        %p231 = pneg %p54
        %p232 = pneg %p51
        %p233 = pneg %p75
        %p234 = pneg %p72
        %s235 = sand.u32 %s21, 1
        %s236 = scalar_lea.sflag [#allocation4], %s235
        %s237 = sand.u32 %s90, 1
        %s238 = smul.addr %s237, 4
        %s239 = scalar_lea.vmem [#allocation8], %s238
        %p240 = pneg %p103
        %p241 = pneg %p100
        %p242 = pneg %p131
        %p243 = pneg %p128
        %s244 = sand.u32 %s118, 1
        %s245 = scalar_lea.sflag [#allocation5], %s244
        %s246 = sand.u32 %s118, 1
        %s247 = smul.addr %s246, 8
        %s248 = scalar_lea.vmem [#allocation9], %s247
        %p250 = scmp.eq.s32.totalorder %s26, 0
        // Predicated region
        $region45: #{tpu_custom_call.1} parent=31 // pred_check
          %p251 = pneg %p250
        $region46: #{tpu_custom_call.1} parent=31 // pred_check_branch
          %253 = sbr.rel (%p251) target = $region48
        $region47: #{tpu_custom_call.1} parent=31 // pred_region
          %v254 = vld [vmem:[#allocation6] sm:$0xff]
          %v255 = vld [vmem:[%s209] sm:$0x1]
          %v257 = vlaneseq
          %v258 = vshrl.u32 %v257, 7
          %v259 = vsub.s32 0, %v258
          %v260 = vrot.slane %v255, %v259
          %v262 = vmul.f32 %v254, %v260
          %v263 = vmul.f32 %v262, %v262
          %vm264 = vcmask 293888
          %v265 = vsel %vm264, %v263, 0.0
          %266 = vadd.xlane.f32.xlu0 %v265
          %v267 = vpop.xlane.xlu0 %266
          %v268 = vadd.f32 %v267, 1e-05
          %v269 = vrsqrt.pop %v268
          %v270 = vmul.f32 %v262, %v269
          %v271 = vpack.c.bf16 %v270, %v270
          %vm272 = vcmask 289792
          %273 = vst.msk [vmem:[#allocation2] sm:$0xf] %vm272, %v271
        $region48: #{tpu_custom_call.1} parent=31 // pred_fallthru
          _
        %v274 = vld [vmem:[%s222] sm:$0x3]
        %v275 = vld [vmem:[%s222] sm:$0xf]
        %v277 = vcombine.low %v275, %v275
        %v279 = vunpack.c.l.s4 1983009808
        %v280 = vunpack.c.0.s8 %v279
        %v281 = vlaneseq
        %v282 = vshrl.u32 %v281, 7
        %v283 = vsub.s32 %v280, %v282
        %v284 = vrot.slane %v277, %v283
        %v286 = vunpack.c.l.s4 1983009808
        %v287 = vunpack.c.0.s8 %v286
        %v288 = vlaneseq
        %v289 = vshrl.u32 %v288, 7
        %v290 = vsub.s32 %v287, %v289
        %v291 = vrot.slane %v275, %v290
        %v292 = vcombine.high %v284, %v284
        %293 = vrot.lane.b32.xlu0 %v284, 127
        %v294 = vpop.permute.xlu0 %293
        %295 = vrot.lane.b32.xlu0 %v292, 127
        %v296 = vpop.permute.xlu0 %295
        %vm297 = vcmask 1039360
        %v298 = vsel %vm297, %v294, %v296
        %v299 = vcombine.low %v291, %v291
        %300 = vrot.lane.b32.xlu0 %v299, 126
        %v301 = vpop.permute.xlu0 %300
        %302 = vrot.lane.b32.xlu0 %v291, 126
        %v303 = vpop.permute.xlu0 %302
        %vm304 = vcmask 1031168
        %v305 = vsel %vm304, %v301, %v303
        %v306 = vcombine.low %v284, %v284
        %307 = vrot.lane.b32.xlu0 %v306, 110
        %v308 = vpop.permute.xlu0 %307
        %309 = vrot.lane.b32.xlu0 %v284, 110
        %v310 = vpop.permute.xlu0 %309
        %vm311 = vcmask 900096
        %v312 = vsel %vm311, %v308, %v310
        %v313 = vcombine.high %v291, %v291
        %314 = vrot.lane.b32.xlu0 %v291, 109
        %v315 = vpop.permute.xlu0 %314
        %316 = vrot.lane.b32.xlu0 %v313, 109
        %v317 = vpop.permute.xlu0 %316
        %vm318 = vcmask 891904
        %v319 = vsel %vm318, %v315, %v317
        %320 = vrot.lane.b32.xlu0 %v284, 108
        %v321 = vpop.permute.xlu0 %320
        %322 = vrot.lane.b32.xlu0 %v292, 108
        %v323 = vpop.permute.xlu0 %322
        %vm324 = vcmask 883712
        %v325 = vsel %vm324, %v321, %v323
        %326 = vrot.lane.b32.xlu0 %v299, 92
        %v327 = vpop.permute.xlu0 %326
        %328 = vrot.lane.b32.xlu0 %v291, 92
        %v329 = vpop.permute.xlu0 %328
        %vm330 = vcmask 752640
        %v331 = vsel %vm330, %v327, %v329
        %332 = vrot.lane.b32.xlu0 %v306, 91
        %v333 = vpop.permute.xlu0 %332
        %334 = vrot.lane.b32.xlu0 %v284, 91
        %v335 = vpop.permute.xlu0 %334
        %vm336 = vcmask 744448
        %v337 = vsel %vm336, %v333, %v335
        %338 = vrot.lane.b32.xlu0 %v291, 90
        %v339 = vpop.permute.xlu0 %338
        %340 = vrot.lane.b32.xlu0 %v313, 90
        %v341 = vpop.permute.xlu0 %340
        %vm342 = vcmask 736256
        %v343 = vsel %vm342, %v339, %v341
        %vm344 = vcmask 1041408
        %v347 = vsel %vm344, %v274, %v298
        %vm348 = vcmask 1043456
        %v350 = vsel %vm348, %v347, %v305
        %vm351 = vcmask 1045504
        %v353 = vsel %vm351, %v350, %v312
        %v357 = vsel %vm344, %v319, %v325
        %v359 = vsel %vm348, %v357, %v331
        %v361 = vsel %vm351, %v359, %v337
        %v363 = vld [vmem:[#allocation2] sm:$0xf]
        %vm364 = vcmask 293888
        %v366 = vsel %vm364, %v363, 0
        %v369 = vsel %vm344, %v343, 0
        %371 = vmatprep.subr.bf16.mxu0 0
        %372 = vmatpush1.bf16.msra.mxu0 %v353
        %373 = vmatprep.subr.bf16.mxu0 0
        %374 = vmatpush1.bf16.msra.mxu0 %v361
        %375 = vmatprep.subr.bf16.mxu0 0
        %376 = vmatpush1.bf16.msra.mxu0 %v369
        %377 = vmatprep.subr.bf16.mxu0 0
        %378 = vmatpush1.bf16.msra.mxu0 0
        %379 = vmatprep.subr.bf16.mxu0 0
        %380 = vmatpush1.bf16.msra.mxu0 0
        %381 = vmatprep.subr.bf16.mxu0 0
        %382 = vmatpush1.bf16.msra.mxu0 0
        %383 = vmatprep.subr.bf16.mxu0 0
        %384 = vmatpush1.bf16.msra.mxu0 0
        %385 = vmatprep.subr.bf16.mxu0 0
        %386 = vmatpush1.bf16.msra.mxu0 0
        %387 = vmatprep.subr.bf16.mxu0 0
        %388 = vmatpush1.bf16.msra.mxu0 0
        %389 = vmatprep.subr.bf16.mxu0 0
        %390 = vmatpush1.bf16.msra.mxu0 0
        %391 = vmatprep.subr.bf16.mxu0 0
        %392 = vmatpush1.bf16.msra.mxu0 0
        %393 = vmatprep.subr.bf16.mxu0 0
        %394 = vmatpush1.bf16.msra.mxu0 0
        %395 = vmatprep.subr.bf16.mxu0 0
        %396 = vmatpush1.bf16.msra.mxu0 0
        %397 = vmatprep.subr.bf16.mxu0 0
        %398 = vmatpush1.bf16.msra.mxu0 0
        %399 = vmatprep.subr.bf16.mxu0 0
        %400 = vmatpush1.bf16.msra.mxu0 0
        %401 = vmatprep.subr.bf16.mxu0 0
        %402 = vmatpush1.bf16.msra.mxu0 0
        %403 = vmatprep.mubr.bf16.mxu0 0
        %404 = vmatmul.mubr.bf16.gmra.mrb[0].mxu0 %v366
        %v405 = vpop.f32.mrb[0].mxu0
        %v406 = vadd.f32 0.0, %v405
        %v407 = vpop.f32.mrb[0].mxu0
        %v408 = vpop.f32.mrb[0].mxu0
        %v409 = vpop.f32.mrb[0].mxu0
        %410 = vdwg.mxu0
        %411 = vst [vmem:[%s248] sm:$0xff] %v406
        %s412 = sand.u32 %s118, 1
        %s413 = scalar_lea.sflag [#allocation5], %s412
        %s414 = sand.u32 %s118, 1
        %s415 = smul.addr %s414, 8
        %s416 = scalar_lea.vmem [#allocation9], %s415
        // Predicated region
        $region49: #{tpu_custom_call.1} parent=31 // pred_check
          %p417 = pneg %p128
        $region50: #{tpu_custom_call.1} parent=31 // pred_check_branch
          %419 = sbr.rel (%p417) target = $region52
        $region51: #{tpu_custom_call.1} parent=31 // pred_region
          %s421 = ssub.s32 128, 128
          %422 = vsyncadd %s413, %s421
          %s423 = smul.addr %s25, 3
          %s424 = sadd.s32 %s26, %s423
          %s425 = smul.addr %s424, 128
          %s426 = scalar_lea.hbm %s3, %s425
          %s428 = sshll.u32 %s416, 4
          %s429 = int_to_ptr.vmem [resolvable:$true] %s428
          %431 = dma.vmem_to_hbm [thread:$0]  %s429, 128, %s426, %s413
        $region52: #{tpu_custom_call.1} parent=31 // pred_fallthru
          _
      $region32: #{tpu_custom_call.1} parent=5 // pred_fallthru
        _
      %p432 = scmp.le.s32.totalorder 2, %s16
      // Predicated region
      $region53: #{tpu_custom_call.1} parent=5 // pred_check
        %p433 = pneg %p432
      $region54: #{tpu_custom_call.1} parent=5 // pred_check_branch
        %435 = sbr.rel (%p433) target = $region56
      $region55: #{tpu_custom_call.1} parent=5 // pred_region
        %s436 = ssub.s32 %s16, 2
        // Predicated region
        $region57: #{tpu_custom_call.1} parent=55 // pred_check
          %p437 = pneg %p134
        $region58: #{tpu_custom_call.1} parent=55 // pred_check_branch
          %439 = sbr.rel (%p437) target = $region60
        $region59: #{tpu_custom_call.1} parent=55 // pred_region
          %s440 = sand.u32 %s119, 1
          %s441 = scalar_lea.sflag [#allocation5], %s440
          %s442 = sand.u32 %s119, 1
          %s443 = smul.addr %s442, 8
          %s444 = scalar_lea.vmem [#allocation9], %s443
          %445 = dma.done %s441, 128
        $region60: #{tpu_custom_call.1} parent=55 // pred_fallthru
          _
      $region56: #{tpu_custom_call.1} parent=5 // pred_fallthru
        _
    $region6: #{tpu_custom_call.1} parent=1 // loop_footer
      %s20 = sadd.s32 1, %s16
    $region7: #{tpu_custom_call.1} parent=1 // loop_footer_branch
      %15 = sbr.rel target = $region3
    $region8: #{tpu_custom_call.1} parent=1 // loop_exit
      _
    %446 = vsyncpa [#allocation4], 1
    %s447 = scalar_lea.sflag [#allocation4], 1
    %448 = vsyncpa %s447, 1
    %449 = vsyncpa [#allocation7], 1
    %450 = vsyncpa [#allocation5], 1
    %s451 = scalar_lea.sflag [#allocation5], 1
    %452 = vsyncpa %s451, 1

</llo_original>
